<compile_context>
chip_gen: v7x
topology: tpu7x:2x2x1
jax: 0.10.0
libtpu: 0.0.40
codegen_flags: <defaults>
</compile_context>

<pallas_src>
import functools

import jax
import jax.numpy as jnp
from jax.experimental import pallas as pl
from jax.experimental.pallas import tpu as pltpu


def _fold_kernel(c_ref, s1_ref, e_ref, w25_ref, w43_ref, w6_ref, b_ref, out_ref):
    """One batch block; activations are laid out as (channels, TB*num_sample)."""
    dot = functools.partial(jnp.dot, preferred_element_type=jnp.float32)
    bf16 = jnp.bfloat16
    h = s1_ref.shape[0]

    # Single merged broadcast matmul: (2H, TB) x (TB, TB*N) -> (2H, TB*N).
    ce = dot(c_ref[...], e_ref[...])
    c1 = ce[:h]            # folding1 feature term (includes b1)
    c2 = ce[h:]            # folding2 feature term (includes b4 + w4a @ b3)

    b = b_ref[...]         # (H2, 3): [b2 | b5 | b6 (zero-padded to 8 rows)]
    b2 = b[:, 0:1]
    b5 = b[:, 1:2]
    b6 = b[:8, 2:3]

    # ---- folding1 ----
    h1 = jnp.maximum(s1_ref[...].astype(jnp.float32) + c1, 0.0)       # (H,  TBN)
    h2 = jnp.maximum(dot(w25_ref[0], h1.astype(bf16)) + b2, 0.0)      # (H2, TBN)
    # ---- folding2 (conv3 fused into conv4's fd1 branch: w43 = w4a @ w3) ----
    h3 = jnp.maximum(dot(w43_ref[...], h2.astype(bf16)) + c2, 0.0)    # (H,  TBN)
    h4 = jnp.maximum(dot(w25_ref[1], h3.astype(bf16)) + b5, 0.0)      # (H2, TBN)
    out_ref[...] = dot(w6_ref[...], h4.astype(bf16)) + b6             # (8,  TBN)


def _fold_bn_into_conv(w, b, gamma, beta, mean, var, eps=1e-5):
    """Fold eval-mode BatchNorm1d into a 1x1 Conv1d (w: (O, I), b: (O,))."""
    scale = gamma / jnp.sqrt(var + eps)
    return w * scale[:, None], scale * (b - mean) + beta


def _tpu_hw():
    """(vmem_capacity_bytes, tensorcores_per_chip) with conservative fallbacks."""
    vmem_bytes = 64 * 1024 * 1024   # conservative default: v7x has the smallest VMEM
    n_tc = 1
    try:
        info = pltpu.get_tpu_info()
        cap = getattr(info, "vmem_capacity_bytes", None)
        if cap:
            vmem_bytes = int(cap)
        for name in ("num_tensorcores", "tensorcores_per_chip", "num_cores", "core_count"):
            val = getattr(info, name, None)
            if val:
                n_tc = max(1, min(2, int(val)))
                break
    except Exception:
        pass
    return vmem_bytes, n_tc


def _block_vmem_bytes(tb, num_sample, h, h2):
    """Rough per-block VMEM footprint: intermediates + pipelined/constant buffers."""
    tbn = tb * num_sample
    acts = 4 * tbn * (2 * h + 2 * (h + h2) + 8)        # ce, h1..h4, out tile (f32)
    acts += 2 * tbn * (h + h2)                         # bf16 dot operands (peak)
    consts = 2 * (h * tbn + 2 * h2 * h + h * h2 + 8 * h2)   # bf16 constants (s1, w25, w43, w6)
    consts += 4 * (tb * tbn + 3 * h2)                        # e, b_pack (f32)
    io = 4 * (2 * h * tb + 8 * tbn)                          # c input + out tile (f32)
    return int(1.5 * acts + 2 * (consts + io))               # 2x for double-buffering


def _choose_tb(bs, num_sample, hidden_dim, vmem_bytes, n_tc):
    """Batch-block size: ~1024 lanes when possible, VMEM-bounded, TC-balanced."""
    h, h2 = hidden_dim, hidden_dim // 2
    budget = max(8 << 20, int(0.40 * vmem_bytes))
    # Largest TB with TB*N <= ~1024 lanes (512-1024 target) that fits the VMEM budget.
    tb = max(1, min(bs, -(-1024 // num_sample)))
    while tb > 1 and _block_vmem_bytes(tb, num_sample, h, h2) > budget:
        tb -= 1
    # Multi-TensorCore chips (v7x): round block count up to a multiple of the core
    # count so both cores carry balanced work. 1-TC chips (v5e/v6e): one big block.
    if n_tc > 1 and bs >= n_tc:
        nblk = -(-bs // tb)
        nblk_bal = -(-nblk // n_tc) * n_tc
        tb_bal = -(-bs // nblk_bal)
        if tb_bal * num_sample >= 128 or tb_bal == tb:
            tb = tb_bal
    return tb


def _full_spec(a):
    nd = a.ndim
    return pl.BlockSpec(a.shape, lambda i, _nd=nd: (0,) * _nd)


def make_fold(in_channel, step, hidden_dim, key):
    """Build deterministic parameters and return (apply_fn, reference_fn, params)."""
    num_sample = step * step
    h, h2 = hidden_dim, hidden_dim // 2
    assert hidden_dim % 8 == 0 and h2 >= 8, "need hidden_dim % 8 == 0 and hidden_dim//2 >= 8"

    # folding seed (2, step*step), same construction as the torch module
    lin = jnp.linspace(-1.0, 1.0, step, dtype=jnp.float32)
    a = jnp.tile(lin, step)            # fast index varies
    b = jnp.repeat(lin, step)          # slow index varies
    seed = jnp.stack([a, b], axis=0)   # (2, N)

    def conv(key, o, i):
        kw, kb = jax.random.split(key)
        w = jax.random.normal(kw, (o, i), jnp.float32) * 0.1
        bb = jax.random.normal(kb, (o,), jnp.float32) * 0.05
        return w, bb

    def bn(key, c):
        kg, kb, km, kv = jax.random.split(key, 4)
        gamma = 1.0 + 0.1 * jax.random.normal(kg, (c,), jnp.float32)
        beta = 0.1 * jax.random.normal(kb, (c,), jnp.float32)
        mean = 0.1 * jax.random.normal(km, (c,), jnp.float32)
        var = 1.0 + 0.1 * jax.random.uniform(kv, (c,), jnp.float32)
        return gamma, beta, mean, var

    keys = jax.random.split(key, 10)
    # folding1: conv(C+2->H)+BN, conv(H->H2)+BN, conv(H2->3)
    w1, bb1 = conv(keys[0], h, in_channel + 2)
    w1, bb1 = _fold_bn_into_conv(w1, bb1, *bn(keys[1], h))
    w2, bb2 = conv(keys[2], h2, h)
    w2, bb2 = _fold_bn_into_conv(w2, bb2, *bn(keys[3], h2))
    w3, bb3 = conv(keys[4], 3, h2)
    # folding2: conv(C+3->H)+BN, conv(H->H2)+BN, conv(H2->3)
    w4, bb4 = conv(keys[5], h, in_channel + 3)
    w4, bb4 = _fold_bn_into_conv(w4, bb4, *bn(keys[6], h))
    w5, bb5 = conv(keys[7], h2, h)
    w5, bb5 = _fold_bn_into_conv(w5, bb5, *bn(keys[8], h2))
    w6, bb6 = conv(keys[9], 3, h2)

    # split concat-matmuls
    w1a, w1b = w1[:, :2], w1[:, 2:]      # (H, 2), (H, C)
    w4a, w4b = w4[:, :3], w4[:, 3:]      # (H, 3), (H, C)

    # ---- hoisted / packed parameters (computed once, outside the kernel) ----
    hp = functools.partial(jnp.dot, precision="highest")
    s1 = hp(w1a, seed)                                   # (H, N)  batch-invariant
    w43 = hp(w4a, w3)                                    # (H, H2) conv3 fused into conv4a
    w_feat = jnp.concatenate([w1b, w4b], axis=0)         # (2H, C) hoisted feature GEMM
    b_feat = jnp.concatenate([bb1, bb4 + hp(w4a, bb3)])  # (2H,)   b1 | b4 + w4a@b3
    w25 = jnp.stack([w2, w5], axis=0)                    # (2, H2, H)
    w6p = jnp.zeros((8, h2), jnp.float32).at[:3, :].set(w6)   # channel-pad 3 -> 8
    b6p = jnp.zeros((8,), jnp.float32).at[:3].set(bb6)
    b6_col = jnp.zeros((h2,), jnp.float32).at[:8].set(b6p)
    b_pack = jnp.stack([bb2, bb5, b6_col], axis=1)       # (H2, 3)

    # bf16 MXU operand storage (f32 accumulation happens inside the kernel).
    w25_bf = w25.astype(jnp.bfloat16)
    w43_bf = w43.astype(jnp.bfloat16)
    w6_bf = w6p.astype(jnp.bfloat16)

    vmem_bytes, n_tc = _tpu_hw()

    params = dict(w1=w1, b1=bb1, w2=w2, b2=bb2, w3=w3, b3=bb3,
                  w4=w4, b4=bb4, w5=w5, b5=bb5, w6=w6, b6=bb6)

    @jax.jit
    def apply(x):
        """x: (bs, in_channel) float32 -> (bs, 3, step*step) float32."""
        bs = x.shape[0]
        tb = _choose_tb(bs, num_sample, hidden_dim, vmem_bytes, n_tc)
        nblk = -(-bs // tb)
        bs_pad = nblk * tb
        tbn = tb * num_sample

        xf = x.astype(jnp.float32)
        if bs_pad != bs:
            xf = jnp.concatenate(
                [xf, jnp.zeros((bs_pad - bs, in_channel), jnp.float32)], axis=0)

        # Hoisted XLA GEMM: both per-batch feature terms in one shot -> (bs_pad, 2H).
        c_all = jnp.dot(xf, w_feat.T, precision="highest") + b_feat
        # (bs_pad, 2H) -> (nblk, 2H, TB): block i, column t  <->  batch i*TB + t.
        c_arr = c_all.T.reshape(2 * h, nblk, tb).transpose(1, 0, 2)

        # Batch-invariant constants for this block size.
        s1_t = jnp.tile(s1, (1, tb)).astype(jnp.bfloat16)                        # (H, TBN)
        e_mat = jnp.repeat(jnp.eye(tb, dtype=jnp.float32), num_sample, axis=1)   # (TB, TBN)

        const_args = (s1_t, e_mat, w25_bf, w43_bf, w6_bf, b_pack)
        const_specs = [_full_spec(arr) for arr in const_args]

        flops = int(nblk * 2 * tbn * (2 * h * tb + 3 * h * h2 + 8 * h2))
        bytes_acc = int(c_arr.nbytes + sum(arr.nbytes for arr in const_args)
                        + nblk * 8 * tbn * 4)
        vmem_limit = int(min(max(32 << 20, 2 * _block_vmem_bytes(tb, num_sample, h, h2)),
                             int(0.75 * vmem_bytes)))

        out = pl.pallas_call(
            _fold_kernel,
            out_shape=jax.ShapeDtypeStruct((nblk, 8, tbn), jnp.float32),
            grid_spec=pltpu.PrefetchScalarGridSpec(
                num_scalar_prefetch=0,
                grid=(nblk,),
                in_specs=[pl.BlockSpec((None, 2 * h, tb), lambda i: (i, 0, 0))]
                         + const_specs,
                out_specs=pl.BlockSpec((None, 8, tbn), lambda i: (i, 0, 0)),
            ),
            compiler_params=pltpu.CompilerParams(
                dimension_semantics=("parallel",),
                vmem_limit_bytes=vmem_limit),
            cost_estimate=pl.CostEstimate(
                flops=flops, transcendentals=0, bytes_accessed=bytes_acc),
        )(c_arr, *const_args)

        # (nblk, 8, TB*N) -> (bs, 3, N)
        out = out.reshape(nblk, 8, tb, num_sample).transpose(0, 2, 1, 3)
        return out.reshape(bs_pad, 8, num_sample)[:bs, :3]

    def reference(x):
        """Pure-JAX reference with identical (BN-folded) per-layer parameters."""
        bs = x.shape[0]
        feat = jnp.broadcast_to(x[:, :, None].astype(jnp.float32),
                                (bs, in_channel, num_sample))
        sd = jnp.broadcast_to(seed[None], (bs, 2, num_sample))
        relu = lambda v: jnp.maximum(v, 0.0)
        ein = functools.partial(jnp.einsum, precision="highest")
        x1 = jnp.concatenate([sd, feat], axis=1)
        h1 = relu(ein("oc,bcn->bon", w1, x1) + bb1[None, :, None])
        hh2 = relu(ein("oc,bcn->bon", w2, h1) + bb2[None, :, None])
        fd1 = ein("oc,bcn->bon", w3, hh2) + bb3[None, :, None]
        x2 = jnp.concatenate([fd1, feat], axis=1)
        h3 = relu(ein("oc,bcn->bon", w4, x2) + bb4[None, :, None])
        h4 = relu(ein("oc,bcn->bon", w5, h3) + bb5[None, :, None])
        return ein("oc,bcn->bon", w6, h4) + bb6[None, :, None]

    return apply, reference, params


if __name__ == "__main__":
    bs, in_channel, step, hidden_dim = 4, 8, 8, 32  # num_sample = 64

    key = jax.random.PRNGKey(0)
    k_param, k_x = jax.random.split(key)
    apply_fn, ref_fn, _ = make_fold(in_channel, step, hidden_dim, k_param)

    x = jax.random.normal(k_x, (bs, in_channel), jnp.float32)

    out = jax.block_until_ready(apply_fn(x))
    ref = jax.block_until_ready(ref_fn(x))

    assert out.shape == (bs, 3, step * step), out.shape
    max_err = float(jnp.max(jnp.abs(out - ref)))
    # bf16 MXU operands (f32 accumulation): numerics differ from the exact-f32
    # reference at roughly the 1e-3 level, so the tolerance is looser than before.
    assert jnp.allclose(out, ref, atol=3e-2, rtol=3e-2), max_err
    print("KERNEL_OK")
</pallas_src>

<mosaic_0001>
module attributes {stable_mosaic.version = 11 : i64} {
  func.func @_fold_kernel(%arg0: i32, %arg1: memref<1x64x4xf32, #tpu.memory_space<vmem>>, %arg2: memref<32x256xbf16, #tpu.memory_space<vmem>>, %arg3: memref<4x256xf32, #tpu.memory_space<vmem>>, %arg4: memref<2x16x32xbf16, #tpu.memory_space<vmem>>, %arg5: memref<32x16xbf16, #tpu.memory_space<vmem>>, %arg6: memref<8x16xbf16, #tpu.memory_space<vmem>>, %arg7: memref<16x3xf32, #tpu.memory_space<vmem>>, %arg8: memref<1x8x256xf32, #tpu.memory_space<vmem>>) attributes {dimension_semantics = [#tpu.dimension_semantics<parallel>], iteration_bounds = array<i64: 1>, scalar_prefetch = 0 : i64, scratch_operands = 0 : i64, tpu.core_type = #tpu.core_type<tc>, window_params = [{transform_indices = @transform_0, window_bounds = array<i64: 1, 64, 4>}, {pipeline_mode = #tpu.pipeline_mode<synchronous>, transform_indices = @transform_1, window_bounds = array<i64: 32, 256>}, {pipeline_mode = #tpu.pipeline_mode<synchronous>, transform_indices = @transform_2, window_bounds = array<i64: 4, 256>}, {pipeline_mode = #tpu.pipeline_mode<synchronous>, transform_indices = @transform_3, window_bounds = array<i64: 2, 16, 32>}, {pipeline_mode = #tpu.pipeline_mode<synchronous>, transform_indices = @transform_4, window_bounds = array<i64: 32, 16>}, {pipeline_mode = #tpu.pipeline_mode<synchronous>, transform_indices = @transform_5, window_bounds = array<i64: 8, 16>}, {pipeline_mode = #tpu.pipeline_mode<synchronous>, transform_indices = @transform_6, window_bounds = array<i64: 16, 3>}, {transform_indices = @transform_7, window_bounds = array<i64: 1, 8, 256>}]} {
    %c0 = arith.constant 0 : index
    %c0_0 = arith.constant 0 : index
    %c0_1 = arith.constant 0 : index
    %0 = vector.load %arg1[%c0, %c0_0, %c0_1] : memref<1x64x4xf32, #tpu.memory_space<vmem>>, vector<1x64x4xf32>
    %1 = vector.shape_cast %0 : vector<1x64x4xf32> to vector<64x4xf32>
    %c0_2 = arith.constant 0 : index
    %c0_3 = arith.constant 0 : index
    %2 = vector.load %arg3[%c0_2, %c0_3] : memref<4x256xf32, #tpu.memory_space<vmem>>, vector<4x256xf32>
    %cst = arith.constant dense<0.000000e+00> : vector<64x256xf32>
    %3 = tpu.matmul %1, %2, %cst {dimension_numbers = #tpu.dot_dimension_numbers<[1], [0], [0], [1], [0, 0, 1, 1], [], []>} : vector<64x4xf32>, vector<4x256xf32>, vector<64x256xf32> -> vector<64x256xf32>
    %4 = vector.extract_strided_slice %3 {offsets = [0, 0], sizes = [32, 256], strides = [1, 1]} : vector<64x256xf32> to vector<32x256xf32>
    %5 = vector.extract_strided_slice %3 {offsets = [32, 0], sizes = [32, 256], strides = [1, 1]} : vector<64x256xf32> to vector<32x256xf32>
    %c0_4 = arith.constant 0 : index
    %c0_5 = arith.constant 0 : index
    %6 = vector.load %arg7[%c0_4, %c0_5] : memref<16x3xf32, #tpu.memory_space<vmem>>, vector<16x3xf32>
    %7 = vector.extract_strided_slice %6 {offsets = [0, 0], sizes = [16, 1], strides = [1, 1]} : vector<16x3xf32> to vector<16x1xf32>
    %8 = vector.extract_strided_slice %6 {offsets = [0, 1], sizes = [16, 1], strides = [1, 1]} : vector<16x3xf32> to vector<16x1xf32>
    %9 = vector.extract_strided_slice %6 {offsets = [0, 2], sizes = [8, 1], strides = [1, 1]} : vector<16x3xf32> to vector<8x1xf32>
    %c0_6 = arith.constant 0 : index
    %c0_7 = arith.constant 0 : index
    %10 = vector.load %arg2[%c0_6, %c0_7] : memref<32x256xbf16, #tpu.memory_space<vmem>>, vector<32x256xbf16>
    %11 = arith.extf %10 : vector<32x256xbf16> to vector<32x256xf32>
    %12 = arith.addf %11, %4 : vector<32x256xf32>
    %cst_8 = arith.constant 0.000000e+00 : f32
    %13 = vector.broadcast %cst_8 : f32 to vector<32x256xf32>
    %14 = arith.maximumf %12, %13 : vector<32x256xf32>
    %c0_9 = arith.constant 0 : index
    %c0_10 = arith.constant 0 : index
    %c0_11 = arith.constant 0 : index
    %15 = vector.load %arg4[%c0_9, %c0_10, %c0_11] : memref<2x16x32xbf16, #tpu.memory_space<vmem>>, vector<1x16x32xbf16>
    %16 = vector.shape_cast %15 : vector<1x16x32xbf16> to vector<16x32xbf16>
    %17 = arith.truncf %14 : vector<32x256xf32> to vector<32x256xbf16>
    %cst_12 = arith.constant dense<0.000000e+00> : vector<16x256xf32>
    %18 = tpu.matmul %16, %17, %cst_12 {dimension_numbers = #tpu.dot_dimension_numbers<[1], [0], [0], [1], [0, 0, 1, 1], [], []>} : vector<16x32xbf16>, vector<32x256xbf16>, vector<16x256xf32> -> vector<16x256xf32>
    %19 = vector.broadcast %7 : vector<16x1xf32> to vector<16x256xf32>
    %20 = arith.addf %18, %19 : vector<16x256xf32>
    %cst_13 = arith.constant 0.000000e+00 : f32
    %21 = vector.broadcast %cst_13 : f32 to vector<16x256xf32>
    %22 = arith.maximumf %20, %21 : vector<16x256xf32>
    %c0_14 = arith.constant 0 : index
    %c0_15 = arith.constant 0 : index
    %23 = vector.load %arg5[%c0_14, %c0_15] : memref<32x16xbf16, #tpu.memory_space<vmem>>, vector<32x16xbf16>
    %24 = arith.truncf %22 : vector<16x256xf32> to vector<16x256xbf16>
    %cst_16 = arith.constant dense<0.000000e+00> : vector<32x256xf32>
    %25 = tpu.matmul %23, %24, %cst_16 {dimension_numbers = #tpu.dot_dimension_numbers<[1], [0], [0], [1], [0, 0, 1, 1], [], []>} : vector<32x16xbf16>, vector<16x256xbf16>, vector<32x256xf32> -> vector<32x256xf32>
    %26 = arith.addf %25, %5 : vector<32x256xf32>
    %cst_17 = arith.constant 0.000000e+00 : f32
    %27 = vector.broadcast %cst_17 : f32 to vector<32x256xf32>
    %28 = arith.maximumf %26, %27 : vector<32x256xf32>
    %c1 = arith.constant 1 : index
    %c0_18 = arith.constant 0 : index
    %c0_19 = arith.constant 0 : index
    %29 = vector.load %arg4[%c1, %c0_18, %c0_19] : memref<2x16x32xbf16, #tpu.memory_space<vmem>>, vector<1x16x32xbf16>
    %30 = vector.shape_cast %29 : vector<1x16x32xbf16> to vector<16x32xbf16>
    %31 = arith.truncf %28 : vector<32x256xf32> to vector<32x256xbf16>
    %cst_20 = arith.constant dense<0.000000e+00> : vector<16x256xf32>
    %32 = tpu.matmul %30, %31, %cst_20 {dimension_numbers = #tpu.dot_dimension_numbers<[1], [0], [0], [1], [0, 0, 1, 1], [], []>} : vector<16x32xbf16>, vector<32x256xbf16>, vector<16x256xf32> -> vector<16x256xf32>
    %33 = vector.broadcast %8 : vector<16x1xf32> to vector<16x256xf32>
    %34 = arith.addf %32, %33 : vector<16x256xf32>
    %cst_21 = arith.constant 0.000000e+00 : f32
    %35 = vector.broadcast %cst_21 : f32 to vector<16x256xf32>
    %36 = arith.maximumf %34, %35 : vector<16x256xf32>
    %c0_22 = arith.constant 0 : index
    %c0_23 = arith.constant 0 : index
    %37 = vector.load %arg6[%c0_22, %c0_23] : memref<8x16xbf16, #tpu.memory_space<vmem>>, vector<8x16xbf16>
    %38 = arith.truncf %36 : vector<16x256xf32> to vector<16x256xbf16>
    %cst_24 = arith.constant dense<0.000000e+00> : vector<8x256xf32>
    %39 = tpu.matmul %37, %38, %cst_24 {dimension_numbers = #tpu.dot_dimension_numbers<[1], [0], [0], [1], [0, 0, 1, 1], [], []>} : vector<8x16xbf16>, vector<16x256xbf16>, vector<8x256xf32> -> vector<8x256xf32>
    %40 = vector.broadcast %9 : vector<8x1xf32> to vector<8x256xf32>
    %41 = arith.addf %39, %40 : vector<8x256xf32>
    %c0_25 = arith.constant 0 : index
    %c0_26 = arith.constant 0 : index
    %c0_27 = arith.constant 0 : index
    %42 = vector.load %arg8[%c0_25, %c0_26, %c0_27] : memref<1x8x256xf32, #tpu.memory_space<vmem>>, vector<1x8x256xf32>
    %43 = vector.shape_cast %42 : vector<1x8x256xf32> to vector<8x256xf32>
    %44 = vector.shape_cast %41 : vector<8x256xf32> to vector<1x8x256xf32>
    tpu.vector_store %arg8[%c0_25, %c0_26, %c0_27], %44 {strides = array<i32>} : memref<1x8x256xf32, #tpu.memory_space<vmem>>, vector<1x8x256xf32>,
    return
  }
  func.func @transform_0(%arg0: i32) -> (i32, i32, i32) {
    %c0_i32 = arith.constant 0 : i32
    %c0_i32_0 = arith.constant 0 : i32
    %c0_i32_1 = arith.constant 0 : i32
    return %arg0, %c0_i32, %c0_i32_0 : i32, i32, i32
  }
  func.func @transform_1(%arg0: i32) -> (i32, i32) {
    %c0_i32 = arith.constant 0 : i32
    %c0_i32_0 = arith.constant 0 : i32
    %c0_i32_1 = arith.constant 0 : i32
    return %c0_i32, %c0_i32_0 : i32, i32
  }
  func.func @transform_2(%arg0: i32) -> (i32, i32) {
    %c0_i32 = arith.constant 0 : i32
    %c0_i32_0 = arith.constant 0 : i32
    %c0_i32_1 = arith.constant 0 : i32
    return %c0_i32, %c0_i32_0 : i32, i32
  }
  func.func @transform_3(%arg0: i32) -> (i32, i32, i32) {
    %c0_i32 = arith.constant 0 : i32
    %c0_i32_0 = arith.constant 0 : i32
    %c0_i32_1 = arith.constant 0 : i32
    %c0_i32_2 = arith.constant 0 : i32
    return %c0_i32, %c0_i32_0, %c0_i32_1 : i32, i32, i32
  }
  func.func @transform_4(%arg0: i32) -> (i32, i32) {
    %c0_i32 = arith.constant 0 : i32
    %c0_i32_0 = arith.constant 0 : i32
    %c0_i32_1 = arith.constant 0 : i32
    return %c0_i32, %c0_i32_0 : i32, i32
  }
  func.func @transform_5(%arg0: i32) -> (i32, i32) {
    %c0_i32 = arith.constant 0 : i32
    %c0_i32_0 = arith.constant 0 : i32
    %c0_i32_1 = arith.constant 0 : i32
    return %c0_i32, %c0_i32_0 : i32, i32
  }
  func.func @transform_6(%arg0: i32) -> (i32, i32) {
    %c0_i32 = arith.constant 0 : i32
    %c0_i32_0 = arith.constant 0 : i32
    %c0_i32_1 = arith.constant 0 : i32
    return %c0_i32, %c0_i32_0 : i32, i32
  }
  func.func @transform_7(%arg0: i32) -> (i32, i32, i32) {
    %c0_i32 = arith.constant 0 : i32
    %c0_i32_0 = arith.constant 0 : i32
    %c0_i32_1 = arith.constant 0 : i32
    return %arg0, %c0_i32, %c0_i32_0 : i32, i32, i32
  }
}

</mosaic_0001>

<llo_original>
// kernel: apply.1
$region0: #{apply.1}
  #allocation0 [shape = 'u32[]', space=smem, size = 0x4, offset = 0x4, fixed_abs, tag = 'smem constant byte address 0x4 - core index']
  #allocation1 [shape = 'u32[144,128]{1,0:T(1,128)}', space=vmem, size = 0x12000, scoped, tag = 'internal scratch']
  %s0 = inlined_call_operand.vmem [shape: f32[1,64,4], index: 0, kind: input, shape index: {}]
  %s1 = inlined_call_operand.vmem [shape: bf16[32,256], index: 1, kind: input, shape index: {}]
  %s2 = inlined_call_operand.vmem [shape: f32[4,256], index: 2, kind: input, shape index: {}]
  %s3 = inlined_call_operand.vmem [shape: bf16[2,16,32], index: 3, kind: input, shape index: {}]
  %s4 = inlined_call_operand.vmem [shape: bf16[32,16], index: 4, kind: input, shape index: {}]
  %s5 = inlined_call_operand.vmem [shape: bf16[8,16], index: 5, kind: input, shape index: {}]
  %s6 = inlined_call_operand.vmem [shape: f32[16,3], index: 6, kind: input, shape index: {}]
  %s7 = inlined_call_operand.vmem [shape: f32[1,8,256], index: 7, kind: output, shape index: {}]
  %s8 = sld [smem:[#allocation0]]
  $region38: #{apply.1} parent=0
    _
  %s10 = ssub.s32 1, %s8
  %s11 = scalar_select 0, %s10, %s8
  // Predicated region
  $region2: #{apply.1} parent=0 // pred_check
    _
  $region3: #{apply.1} parent=0 // pred_check_branch
    %13 = sbr.rel (0) target = $region5
  $region4: #{apply.1} parent=0 // pred_region
    _
  $region5: #{apply.1} parent=0 // pred_fallthru
    _
  // Predicated region
  $region6: #{apply.1} parent=0 // pred_check
    _
  $region7: #{apply.1} parent=0 // pred_check_branch
    %15 = sbr.rel (0) target = $region9
  $region8: #{apply.1} parent=0 // pred_region
    _
  $region9: #{apply.1} parent=0 // pred_fallthru
    _
  // Predicated region
  $region10: #{apply.1} parent=0 // pred_check
    _
  $region11: #{apply.1} parent=0 // pred_check_branch
    %17 = sbr.rel (0) target = $region13
  $region12: #{apply.1} parent=0 // pred_region
    _
  $region13: #{apply.1} parent=0 // pred_fallthru
    _
  // Predicated region
  $region14: #{apply.1} parent=0 // pred_check
    _
  $region15: #{apply.1} parent=0 // pred_check_branch
    %19 = sbr.rel (0) target = $region17
  $region16: #{apply.1} parent=0 // pred_region
    _
  $region17: #{apply.1} parent=0 // pred_fallthru
    _
  // Predicated region
  $region18: #{apply.1} parent=0 // pred_check
    _
  $region19: #{apply.1} parent=0 // pred_check_branch
    %21 = sbr.rel (0) target = $region21
  $region20: #{apply.1} parent=0 // pred_region
    _
  $region21: #{apply.1} parent=0 // pred_fallthru
    _
  // Predicated region
  $region22: #{apply.1} parent=0 // pred_check
    _
  $region23: #{apply.1} parent=0 // pred_check_branch
    %23 = sbr.rel (0) target = $region25
  $region24: #{apply.1} parent=0 // pred_region
    _
  $region25: #{apply.1} parent=0 // pred_fallthru
    _
  // Predicated region
  $region26: #{apply.1} parent=0 // pred_check
    _
  $region27: #{apply.1} parent=0 // pred_check_branch
    %25 = sbr.rel (0) target = $region29
  $region28: #{apply.1} parent=0 // pred_region
    _
  $region29: #{apply.1} parent=0 // pred_fallthru
    _
  %v27 = vld [vmem:[%s0] sm:$0xff]
  %v28 = vld [vmem:[%s0 + $0x8] sm:$0xff]
  %v29 = vld [vmem:[%s0 + $0x10] sm:$0xff]
  %v30 = vld [vmem:[%s0 + $0x18] sm:$0xff]
  %v31 = vld [vmem:[%s0 + $0x20] sm:$0xff]
  %v32 = vld [vmem:[%s0 + $0x28] sm:$0xff]
  %v33 = vld [vmem:[%s0 + $0x30] sm:$0xff]
  %v34 = vld [vmem:[%s0 + $0x38] sm:$0xff]
  %v35 = vld [vmem:[%s2] sm:$0xff]
  %v37 = vcombine.high %v35, %v35
  %vm38 = vcmask 31744
  %v40 = vsel %vm38, %v27, 0
  %v43 = vsel %vm38, %v28, 0
  %v46 = vsel %vm38, %v29, 0
  %v49 = vsel %vm38, %v30, 0
  %v52 = vsel %vm38, %v31, 0
  %v55 = vsel %vm38, %v32, 0
  %v58 = vsel %vm38, %v33, 0
  %v61 = vsel %vm38, %v34, 0
  %vm63 = vcmask 1043456
  %v64 = vsel %vm63, %v35, 0
  %v66 = vsel %vm63, %v37, 0
  %68 = vmatprep.subr.mxu0 %v66
  %69 = vmatpush1.msra.mxu0 %v64
  %70 = vmatprep.subr.mxu0 0.0
  %71 = vmatpush1.msra.mxu0 0.0
  %72 = vmatprep.subr.mxu0 0.0
  %73 = vmatpush1.msra.mxu0 0.0
  %74 = vmatprep.subr.mxu0 0.0
  %75 = vmatpush1.msra.mxu0 0.0
  %76 = vmatprep.subr.mxu0 0.0
  %77 = vmatpush1.msra.mxu0 0.0
  %78 = vmatprep.subr.mxu0 0.0
  %79 = vmatpush1.msra.mxu0 0.0
  %80 = vmatprep.subr.mxu0 0.0
  %81 = vmatpush1.msra.mxu0 0.0
  %82 = vmatprep.subr.mxu0 0.0
  %83 = vmatpush1.msra.mxu0 0.0
  %84 = vmatprep.subr.mxu0 0.0
  %85 = vmatpush1.msra.mxu0 0.0
  %86 = vmatprep.subr.mxu0 0.0
  %87 = vmatpush1.msra.mxu0 0.0
  %88 = vmatprep.subr.mxu0 0.0
  %89 = vmatpush1.msra.mxu0 0.0
  %90 = vmatprep.subr.mxu0 0.0
  %91 = vmatpush1.msra.mxu0 0.0
  %92 = vmatprep.subr.mxu0 0.0
  %93 = vmatpush1.msra.mxu0 0.0
  %94 = vmatprep.subr.mxu0 0.0
  %95 = vmatpush1.msra.mxu0 0.0
  %96 = vmatprep.subr.mxu0 0.0
  %97 = vmatpush1.msra.mxu0 0.0
  %98 = vmatprep.subr.mxu0 0.0
  %99 = vmatpush1.msra.mxu0 0.0
  %100 = vmatprep.subr.mxu0 0.0
  %101 = vmatpush1.msra.mxu0 0.0
  %102 = vmatprep.subr.mxu0 0.0
  %103 = vmatpush1.msra.mxu0 0.0
  %104 = vmatprep.subr.mxu0 0.0
  %105 = vmatpush1.msra.mxu0 0.0
  %106 = vmatprep.subr.mxu0 0.0
  %107 = vmatpush1.msra.mxu0 0.0
  %108 = vmatprep.subr.mxu0 0.0
  %109 = vmatpush1.msra.mxu0 0.0
  %110 = vmatprep.subr.mxu0 0.0
  %111 = vmatpush1.msra.mxu0 0.0
  %112 = vmatprep.subr.mxu0 0.0
  %113 = vmatpush1.msra.mxu0 0.0
  %114 = vmatprep.subr.mxu0 0.0
  %115 = vmatpush1.msra.mxu0 0.0
  %116 = vmatprep.subr.mxu0 0.0
  %117 = vmatpush1.msra.mxu0 0.0
  %118 = vmatprep.subr.mxu0 0.0
  %119 = vmatpush1.msra.mxu0 0.0
  %120 = vmatprep.subr.mxu0 0.0
  %121 = vmatpush1.msra.mxu0 0.0
  %122 = vmatprep.subr.mxu0 0.0
  %123 = vmatpush1.msra.mxu0 0.0
  %124 = vmatprep.subr.mxu0 0.0
  %125 = vmatpush1.msra.mxu0 0.0
  %126 = vmatprep.subr.mxu0 0.0
  %127 = vmatpush1.msra.mxu0 0.0
  %128 = vmatprep.subr.mxu0 0.0
  %129 = vmatpush1.msra.mxu0 0.0
  %130 = vmatprep.subr.mxu0 0.0
  %131 = vmatpush1.msra.mxu0 0.0
  %132 = vmatprep.mubr.f32.mxu0 0.0
  %133 = vmatmul.mubr.f32.gmra.mrb[0].mxu0 %v40
  %v134 = vpop.f32.mrb[0].mxu0
  %v135 = vadd.f32 0.0, %v134
  %v136 = vpop.f32.mrb[0].mxu0
  %v137 = vadd.f32 0.0, %v136
  %138 = vmatprep.mubr.f32.mxu0 0.0
  %139 = vmatmul.mubr.f32.gmra.mrb[0].mxu0 %v43
  %v140 = vpop.f32.mrb[0].mxu0
  %v141 = vadd.f32 0.0, %v140
  %v142 = vpop.f32.mrb[0].mxu0
  %v143 = vadd.f32 0.0, %v142
  %144 = vmatprep.mubr.f32.mxu0 0.0
  %145 = vmatmul.mubr.f32.gmra.mrb[0].mxu0 %v46
  %v146 = vpop.f32.mrb[0].mxu0
  %v147 = vadd.f32 0.0, %v146
  %v148 = vpop.f32.mrb[0].mxu0
  %v149 = vadd.f32 0.0, %v148
  %150 = vmatprep.mubr.f32.mxu0 0.0
  %151 = vmatmul.mubr.f32.gmra.mrb[0].mxu0 %v49
  %v152 = vpop.f32.mrb[0].mxu0
  %v153 = vadd.f32 0.0, %v152
  %v154 = vpop.f32.mrb[0].mxu0
  %v155 = vadd.f32 0.0, %v154
  %156 = vmatprep.mubr.f32.mxu0 0.0
  %157 = vmatmul.mubr.f32.gmra.mrb[0].mxu0 %v52
  %v158 = vpop.f32.mrb[0].mxu0
  %v159 = vadd.f32 0.0, %v158
  %v160 = vpop.f32.mrb[0].mxu0
  %v161 = vadd.f32 0.0, %v160
  %162 = vmatprep.mubr.f32.mxu0 0.0
  %163 = vmatmul.mubr.f32.gmra.mrb[0].mxu0 %v55
  %v164 = vpop.f32.mrb[0].mxu0
  %v165 = vadd.f32 0.0, %v164
  %v166 = vpop.f32.mrb[0].mxu0
  %v167 = vadd.f32 0.0, %v166
  %168 = vmatprep.mubr.f32.mxu0 0.0
  %169 = vmatmul.mubr.f32.gmra.mrb[0].mxu0 %v58
  %v170 = vpop.f32.mrb[0].mxu0
  %v171 = vadd.f32 0.0, %v170
  %v172 = vpop.f32.mrb[0].mxu0
  %v173 = vadd.f32 0.0, %v172
  %174 = vmatprep.mubr.f32.mxu0 0.0
  %175 = vmatmul.mubr.f32.gmra.mrb[0].mxu0 %v61
  %v176 = vpop.f32.mrb[0].mxu0
  %v177 = vadd.f32 0.0, %v176
  %v178 = vpop.f32.mrb[0].mxu0
  %v179 = vadd.f32 0.0, %v178
  %180 = vdwg.mxu0
  %v181 = vld [vmem:[%s6] sm:$0xff]
  %v182 = vld [vmem:[%s6 + $0x8] sm:$0xff]
  %v183 = vld [vmem:[%s1] sm:$0xff]
  %v184 = vld [vmem:[%s1 + $0x8] sm:$0xff]
  %v185 = vld [vmem:[%s1 + $0x10] sm:$0xff]
  %v186 = vld [vmem:[%s1 + $0x18] sm:$0xff]
  %v187 = vunpack.c.l.bf16 %v183
  %v188 = vunpack.c.h.bf16 %v183
  %v189 = vunpack.c.l.bf16 %v184
  %v190 = vunpack.c.h.bf16 %v184
  %v191 = vunpack.c.l.bf16 %v185
  %v192 = vunpack.c.h.bf16 %v185
  %v193 = vunpack.c.l.bf16 %v186
  %v194 = vunpack.c.h.bf16 %v186
  %v195 = vadd.f32 %v187, %v135
  %v196 = vadd.f32 %v188, %v137
  %v197 = vadd.f32 %v189, %v141
  %v198 = vadd.f32 %v190, %v143
  %v199 = vadd.f32 %v191, %v147
  %v200 = vadd.f32 %v192, %v149
  %v201 = vadd.f32 %v193, %v153
  %v202 = vadd.f32 %v194, %v155
  %v203 = vmax.f32 %v195, 0.0
  %v204 = vmax.f32 %v196, 0.0
  %v205 = vmax.f32 %v197, 0.0
  %v206 = vmax.f32 %v198, 0.0
  %v207 = vmax.f32 %v199, 0.0
  %v208 = vmax.f32 %v200, 0.0
  %v209 = vmax.f32 %v201, 0.0
  %v210 = vmax.f32 %v202, 0.0
  %v211 = vld [vmem:[%s3] sm:$0xf]
  %v212 = vld [vmem:[%s3 + $0x4] sm:$0xf]
  %v213 = vpack.c.bf16 %v205, %v203
  %v214 = vpack.c.bf16 %v206, %v204
  %v215 = vpack.c.bf16 %v209, %v207
  %v216 = vpack.c.bf16 %v210, %v208
  %218 = vset.pattern.permute.xlu0 0
  %219 = vperm.xlu0 %218, %v181
  %v220 = vpop.permute.xlu0 %219
  %223 = vset.pattern.permute.xlu0 0
  %224 = vperm.xlu0 %223, %v182
  %v225 = vpop.permute.xlu0 %224
  %v229 = vunpack.c.l.b16 %v211
  %v230 = vunpack.c.l.b16 %v212
  %v231 = vpack.c.b16 %v230, %v229
  %vm232 = vcmask 261120
  %v234 = vsel %vm232, %v231, 0
  %236 = vmatprep.subr.bf16.mxu0 %v214
  %237 = vmatpush1.bf16.msra.mxu0 %v213
  %238 = vmatprep.subr.bf16.mxu0 %v216
  %239 = vmatpush1.bf16.msra.mxu0 %v215
  %240 = vmatprep.subr.bf16.mxu0 0
  %241 = vmatpush1.bf16.msra.mxu0 0
  %242 = vmatprep.subr.bf16.mxu0 0
  %243 = vmatpush1.bf16.msra.mxu0 0
  %244 = vmatprep.subr.bf16.mxu0 0
  %245 = vmatpush1.bf16.msra.mxu0 0
  %246 = vmatprep.subr.bf16.mxu0 0
  %247 = vmatpush1.bf16.msra.mxu0 0
  %248 = vmatprep.subr.bf16.mxu0 0
  %249 = vmatpush1.bf16.msra.mxu0 0
  %250 = vmatprep.subr.bf16.mxu0 0
  %251 = vmatpush1.bf16.msra.mxu0 0
  %252 = vmatprep.subr.bf16.mxu0 0
  %253 = vmatpush1.bf16.msra.mxu0 0
  %254 = vmatprep.subr.bf16.mxu0 0
  %255 = vmatpush1.bf16.msra.mxu0 0
  %256 = vmatprep.subr.bf16.mxu0 0
  %257 = vmatpush1.bf16.msra.mxu0 0
  %258 = vmatprep.subr.bf16.mxu0 0
  %259 = vmatpush1.bf16.msra.mxu0 0
  %260 = vmatprep.subr.bf16.mxu0 0
  %261 = vmatpush1.bf16.msra.mxu0 0
  %262 = vmatprep.subr.bf16.mxu0 0
  %263 = vmatpush1.bf16.msra.mxu0 0
  %264 = vmatprep.subr.bf16.mxu0 0
  %265 = vmatpush1.bf16.msra.mxu0 0
  %266 = vmatprep.subr.bf16.mxu0 0
  %267 = vmatpush1.bf16.msra.mxu0 0
  %268 = vmatprep.mubr.bf16.mxu0 0
  %269 = vmatmul.mubr.bf16.gmra.mrb[0].mxu0 %v234
  %v270 = vpop.f32.mrb[0].mxu0
  %v271 = vadd.f32 %v220, %v270
  %v272 = vpop.f32.mrb[0].mxu0
  %v273 = vadd.f32 %v220, %v272
  %v274 = vpop.f32.mrb[0].mxu0
  %v275 = vadd.f32 %v225, %v274
  %v276 = vpop.f32.mrb[0].mxu0
  %v277 = vadd.f32 %v225, %v276
  %278 = vdwg.mxu0
  %v279 = vmax.f32 %v271, 0.0
  %v280 = vmax.f32 %v273, 0.0
  %v281 = vmax.f32 %v275, 0.0
  %v282 = vmax.f32 %v277, 0.0
  %v283 = vld [vmem:[%s4] sm:$0xf]
  %v284 = vld [vmem:[%s4 + $0x4] sm:$0xf]
  %v285 = vld [vmem:[%s4 + $0x8] sm:$0xf]
  %v286 = vld [vmem:[%s4 + $0xc] sm:$0xf]
  %v287 = vpack.c.bf16 %v281, %v279
  %v288 = vpack.c.bf16 %v282, %v280
  %v293 = vunpack.c.l.b16 %v283
  %v294 = vunpack.c.l.b16 %v284
  %v295 = vunpack.c.l.b16 %v285
  %v296 = vunpack.c.l.b16 %v286
  %v297 = vpack.c.b16 %v294, %v293
  %v298 = vpack.c.b16 %v296, %v295
  %vm299 = vcmask 130048
  %v301 = vsel %vm299, %v297, 0
  %v304 = vsel %vm299, %v298, 0
  %306 = vmatprep.subr.bf16.mxu0 %v288
  %307 = vmatpush1.bf16.msra.mxu0 %v287
  %308 = vmatprep.subr.bf16.mxu0 0
  %309 = vmatpush1.bf16.msra.mxu0 0
  %310 = vmatprep.subr.bf16.mxu0 0
  %311 = vmatpush1.bf16.msra.mxu0 0
  %312 = vmatprep.subr.bf16.mxu0 0
  %313 = vmatpush1.bf16.msra.mxu0 0
  %314 = vmatprep.subr.bf16.mxu0 0
  %315 = vmatpush1.bf16.msra.mxu0 0
  %316 = vmatprep.subr.bf16.mxu0 0
  %317 = vmatpush1.bf16.msra.mxu0 0
  %318 = vmatprep.subr.bf16.mxu0 0
  %319 = vmatpush1.bf16.msra.mxu0 0
  %320 = vmatprep.subr.bf16.mxu0 0
  %321 = vmatpush1.bf16.msra.mxu0 0
  %322 = vmatprep.subr.bf16.mxu0 0
  %323 = vmatpush1.bf16.msra.mxu0 0
  %324 = vmatprep.subr.bf16.mxu0 0
  %325 = vmatpush1.bf16.msra.mxu0 0
  %326 = vmatprep.subr.bf16.mxu0 0
  %327 = vmatpush1.bf16.msra.mxu0 0
  %328 = vmatprep.subr.bf16.mxu0 0
  %329 = vmatpush1.bf16.msra.mxu0 0
  %330 = vmatprep.subr.bf16.mxu0 0
  %331 = vmatpush1.bf16.msra.mxu0 0
  %332 = vmatprep.subr.bf16.mxu0 0
  %333 = vmatpush1.bf16.msra.mxu0 0
  %334 = vmatprep.subr.bf16.mxu0 0
  %335 = vmatpush1.bf16.msra.mxu0 0
  %336 = vmatprep.subr.bf16.mxu0 0
  %337 = vmatpush1.bf16.msra.mxu0 0
  %338 = vmatprep.mubr.bf16.mxu0 0
  %339 = vmatmul.mubr.bf16.gmra.mrb[0].mxu0 %v301
  %v340 = vpop.f32.mrb[0].mxu0
  %v341 = vadd.f32 %v159, %v340
  %v342 = vpop.f32.mrb[0].mxu0
  %v343 = vadd.f32 %v161, %v342
  %v344 = vpop.f32.mrb[0].mxu0
  %v345 = vadd.f32 %v165, %v344
  %v346 = vpop.f32.mrb[0].mxu0
  %v347 = vadd.f32 %v167, %v346
  %348 = vmatprep.mubr.bf16.mxu0 0
  %349 = vmatmul.mubr.bf16.gmra.mrb[0].mxu0 %v304
  %v350 = vpop.f32.mrb[0].mxu0
  %v351 = vadd.f32 %v171, %v350
  %v352 = vpop.f32.mrb[0].mxu0
  %v353 = vadd.f32 %v173, %v352
  %v354 = vpop.f32.mrb[0].mxu0
  %v355 = vadd.f32 %v177, %v354
  %v356 = vpop.f32.mrb[0].mxu0
  %v357 = vadd.f32 %v179, %v356
  %358 = vdwg.mxu0
  %v359 = vmax.f32 %v341, 0.0
  %v360 = vmax.f32 %v343, 0.0
  %v361 = vmax.f32 %v345, 0.0
  %v362 = vmax.f32 %v347, 0.0
  %v363 = vmax.f32 %v351, 0.0
  %v364 = vmax.f32 %v353, 0.0
  %v365 = vmax.f32 %v355, 0.0
  %v366 = vmax.f32 %v357, 0.0
  %s367 = scalar_lea.vmem %s3, 8
  %v368 = vld [vmem:[%s367] sm:$0xf]
  %v369 = vld [vmem:[%s367 + $0x4] sm:$0xf]
  %v370 = vpack.c.bf16 %v361, %v359
  %v371 = vpack.c.bf16 %v362, %v360
  %v372 = vpack.c.bf16 %v365, %v363
  %v373 = vpack.c.bf16 %v366, %v364
  %374 = vset.pattern.permute.xlu0 1
  %375 = vperm.xlu0 %374, %v181
  %v376 = vpop.permute.xlu0 %375
  %378 = vset.pattern.permute.xlu0 1
  %379 = vperm.xlu0 %378, %v182
  %v380 = vpop.permute.xlu0 %379
  %v384 = vunpack.c.l.b16 %v368
  %v385 = vunpack.c.l.b16 %v369
  %v386 = vpack.c.b16 %v385, %v384
  %v388 = vsel %vm232, %v386, 0
  %390 = vmatprep.subr.bf16.mxu0 %v371
  %391 = vmatpush1.bf16.msra.mxu0 %v370
  %392 = vmatprep.subr.bf16.mxu0 %v373
  %393 = vmatpush1.bf16.msra.mxu0 %v372
  %394 = vmatprep.subr.bf16.mxu0 0
  %395 = vmatpush1.bf16.msra.mxu0 0
  %396 = vmatprep.subr.bf16.mxu0 0
  %397 = vmatpush1.bf16.msra.mxu0 0
  %398 = vmatprep.subr.bf16.mxu0 0
  %399 = vmatpush1.bf16.msra.mxu0 0
  %400 = vmatprep.subr.bf16.mxu0 0
  %401 = vmatpush1.bf16.msra.mxu0 0
  %402 = vmatprep.subr.bf16.mxu0 0
  %403 = vmatpush1.bf16.msra.mxu0 0
  %404 = vmatprep.subr.bf16.mxu0 0
  %405 = vmatpush1.bf16.msra.mxu0 0
  %406 = vmatprep.subr.bf16.mxu0 0
  %407 = vmatpush1.bf16.msra.mxu0 0
  %408 = vmatprep.subr.bf16.mxu0 0
  %409 = vmatpush1.bf16.msra.mxu0 0
  %410 = vmatprep.subr.bf16.mxu0 0
  %411 = vmatpush1.bf16.msra.mxu0 0
  %412 = vmatprep.subr.bf16.mxu0 0
  %413 = vmatpush1.bf16.msra.mxu0 0
  %414 = vmatprep.subr.bf16.mxu0 0
  %415 = vmatpush1.bf16.msra.mxu0 0
  %416 = vmatprep.subr.bf16.mxu0 0
  %417 = vmatpush1.bf16.msra.mxu0 0
  %418 = vmatprep.subr.bf16.mxu0 0
  %419 = vmatpush1.bf16.msra.mxu0 0
  %420 = vmatprep.subr.bf16.mxu0 0
  %421 = vmatpush1.bf16.msra.mxu0 0
  %422 = vmatprep.mubr.bf16.mxu0 0
  %423 = vmatmul.mubr.bf16.gmra.mrb[0].mxu0 %v388
  %v424 = vpop.f32.mrb[0].mxu0
  %v425 = vadd.f32 %v376, %v424
  %v426 = vpop.f32.mrb[0].mxu0
  %v427 = vadd.f32 %v376, %v426
  %v428 = vpop.f32.mrb[0].mxu0
  %v429 = vadd.f32 %v380, %v428
  %v430 = vpop.f32.mrb[0].mxu0
  %v431 = vadd.f32 %v380, %v430
  %432 = vdwg.mxu0
  %v433 = vmax.f32 %v425, 0.0
  %v434 = vmax.f32 %v427, 0.0
  %v435 = vmax.f32 %v429, 0.0
  %v436 = vmax.f32 %v431, 0.0
  %v437 = vld [vmem:[%s5] sm:$0xf]
  %v438 = vpack.c.bf16 %v435, %v433
  %v439 = vpack.c.bf16 %v436, %v434
  %440 = vset.pattern.permute.xlu0 2
  %441 = vperm.xlu0 %440, %v181
  %v442 = vpop.permute.xlu0 %441
  %v445 = vsel %vm299, %v437, 0
  %447 = vmatprep.subr.bf16.mxu0 %v439
  %448 = vmatpush1.bf16.msra.mxu0 %v438
  %449 = vmatprep.subr.bf16.mxu0 0
  %450 = vmatpush1.bf16.msra.mxu0 0
  %451 = vmatprep.subr.bf16.mxu0 0
  %452 = vmatpush1.bf16.msra.mxu0 0
  %453 = vmatprep.subr.bf16.mxu0 0
  %454 = vmatpush1.bf16.msra.mxu0 0
  %455 = vmatprep.subr.bf16.mxu0 0
  %456 = vmatpush1.bf16.msra.mxu0 0
  %457 = vmatprep.subr.bf16.mxu0 0
  %458 = vmatpush1.bf16.msra.mxu0 0
  %459 = vmatprep.subr.bf16.mxu0 0
  %460 = vmatpush1.bf16.msra.mxu0 0
  %461 = vmatprep.subr.bf16.mxu0 0
  %462 = vmatpush1.bf16.msra.mxu0 0
  %463 = vmatprep.subr.bf16.mxu0 0
  %464 = vmatpush1.bf16.msra.mxu0 0
  %465 = vmatprep.subr.bf16.mxu0 0
  %466 = vmatpush1.bf16.msra.mxu0 0
  %467 = vmatprep.subr.bf16.mxu0 0
  %468 = vmatpush1.bf16.msra.mxu0 0
  %469 = vmatprep.subr.bf16.mxu0 0
  %470 = vmatpush1.bf16.msra.mxu0 0
  %471 = vmatprep.subr.bf16.mxu0 0
  %472 = vmatpush1.bf16.msra.mxu0 0
  %473 = vmatprep.subr.bf16.mxu0 0
  %474 = vmatpush1.bf16.msra.mxu0 0
  %475 = vmatprep.subr.bf16.mxu0 0
  %476 = vmatpush1.bf16.msra.mxu0 0
  %477 = vmatprep.subr.bf16.mxu0 0
  %478 = vmatpush1.bf16.msra.mxu0 0
  %479 = vmatprep.mubr.bf16.mxu0 0
  %480 = vmatmul.mubr.bf16.gmra.mrb[0].mxu0 %v445
  %v481 = vpop.f32.mrb[0].mxu0
  %v482 = vadd.f32 %v442, %v481
  %v483 = vpop.f32.mrb[0].mxu0
  %v484 = vadd.f32 %v442, %v483
  %v485 = vpop.f32.mrb[0].mxu0
  %v486 = vpop.f32.mrb[0].mxu0
  %487 = vdwg.mxu0
  %488 = vst [vmem:[%s7] sm:$0xff] %v482
  %489 = vst [vmem:[%s7 + $0x8] sm:$0xff] %v484
  // Predicated region
  $region30: #{apply.1} parent=0 // pred_check
    _
  $region31: #{apply.1} parent=0 // pred_check_branch
    %491 = sbr.rel (0) target = $region33
  $region32: #{apply.1} parent=0 // pred_region
    _
  $region33: #{apply.1} parent=0 // pred_fallthru
    _
  // Predicated region
  $region34: #{apply.1} parent=0 // pred_check
    _
  $region35: #{apply.1} parent=0 // pred_check_branch
    %493 = sbr.rel (0) target = $region37
  $region36: #{apply.1} parent=0 // pred_region
    _
  $region37: #{apply.1} parent=0 // pred_fallthru
    _

</llo_original>
